<compile_context>
chip_gen: v5e
topology: v5e:2x2
jax: 0.10.0
libtpu: 0.0.40
codegen_flags: <defaults>
</compile_context>

<pallas_src>
import jax
import jax.numpy as jnp
import numpy as np
from jax import lax
from jax.experimental import pallas as pl
from jax.experimental.pallas import tpu as pltpu

# ----- static config (small shapes consistent with the module's forward) -----
B = 2                     # batch
L = 16                    # seq_len
C = 32                    # feature_size
C4 = 4 * C
CK = 4                    # conv_kernel[0] (even, as in MICN)
PAD = CK // 2
DK = 5                    # decomp_kernel[0] (odd, as series_decomp requires)
L1 = (L + 2 * PAD - CK) // CK + 1   # length after the strided conv
KISO = L1                 # isometric_kernel[0]; must equal L1 (residual add)
PF = (DK - 1) // 2
EPS = 1e-5
BL = B * L                # batch folded into rows

assert KISO == L1 and L1 * CK >= L
assert BL == C            # packing stacks (BL,BL) selection & (C,*) weight slabs


# ------------------------------- kernel --------------------------------------
def mic_kernel(src_ref, k32_ref, k128_ref, k160_ref, vecs_ref, out_ref):
    f32 = jnp.float32
    x = src_ref[...]                                  # (BL, C), batch folded

    kdec = k32_ref[0]                                 # (BL, BL)  I - moving_avg
    wm = k32_ref[1]                                   # (C, C)    merge (LN-folded)
    wff = k32_ref[2]                                  # (C, C)    FFN W1@W2 (LN-folded)
    bias_up = k32_ref[3]                              # (BL, C)   convT bias + LN beta
    dasm = k128_ref[0]                                # (BL, CK*BL)   strided-conv assembly
    easm = k128_ref[1]                                # (BL, CK*BL)   conv-transpose assembly
    wd = k128_ref[2]                                  # (C, CK*C)     strided-conv taps
    wt = k128_ref[3]                                  # (C, CK*C)     convT taps (gamma-folded)
    sasm = k160_ref[0]                                # (BL, KISO*BL) isometric assembly
    wi = k160_ref[1]                                  # (C, KISO*C)   isometric taps

    V = vecs_ref[...]                                 # (6, C) packed bias vectors
    bd, bi = V[0:1], V[1:2]
    bm, bff = V[2:3], V[3:4]
    n2g, n2b = V[4:5], V[5:6]

    def mm(a, b):
        return jnp.dot(a, b, preferred_element_type=f32)

    def norm(z):
        # single-pass LN (no affine); activations are O(1) here so the
        # E[x^2]-E[x]^2 form is numerically safe at f32 for the 2e-2 check
        mu = jnp.mean(z, axis=-1, keepdims=True)
        msq = jnp.mean(z * z, axis=-1, keepdims=True)
        return (z - mu) * lax.rsqrt(msq - mu * mu + EPS)

    def stack_taps(wide, taps):
        # (BL, taps*C) -> (taps*BL, C): lane blocks restacked onto sublanes so
        # the assembly becomes ONE matmul with contraction depth taps*BL.
        return jnp.concatenate(
            [wide[:, j * C:(j + 1) * C] for j in range(taps)], axis=0)

    # ---- series_decomp residual: x_in = (I - moving_avg) @ x ----------------
    x_in = mm(kdec, x)                                # (BL, C)

    # ---- Conv1d: kernel CK, stride CK, zero pad CK//2, + tanh ---------------
    x1 = jnp.tanh(mm(dasm, stack_taps(mm(x_in, wd), CK)) + bd)

    # ---- isometric Conv1d on [zeros(L1-1) ++ x1], kernel KISO, stride 1 -----
    # NOTE: rows t >= L1 inside each batch block of x1/xiso/z1 hold
    # tanh(bias)-valued filler; sasm/easm are asserted at pack time to never
    # read those rows, so they cannot leak into the output.
    xiso = jnp.tanh(mm(sasm, stack_taps(mm(x1, wi), KISO)) + bi)

    # ---- residual + LayerNorm (affine folded into wt / bias_up) -------------
    z1 = norm(xiso + x1)

    # ---- ConvTranspose1d: kernel CK, stride CK, crop to first L steps -------
    xt = jnp.tanh(mm(easm, stack_taps(mm(z1, wt), CK)) + bias_up)

    # ---- residual + LayerNorm (affine folded into wm / bm) ------------------
    z2 = norm(xt + x_in)

    # ---- merge Conv2d (1x1, single conv branch) -----------------------------
    mg = mm(z2, wm) + bm

    # ---- feed-forward: LN affine + conv1 bias + conv1@conv2 all folded ------
    y2 = mm(norm(mg), wff) + bff

    out_ref[...] = (norm(mg + y2) * n2g + n2b).astype(out_ref.dtype)


# ----------------------- constant / parameter packing ------------------------
def pack_params(p):
    """PyTorch-layout params -> 4 packed kernel inputs (constants + weights)."""
    hi = lax.Precision.HIGHEST

    # --- series_decomp moving average (edge replication), block-diag on batch
    A = np.zeros((BL, BL), np.float32)
    for b in range(B):
        for t in range(L):
            for j in range(DK):
                s = min(max(t - PF + j, 0), L - 1)
                A[b * L + t, b * L + s] += 1.0 / DK
    kdec = np.eye(BL, dtype=np.float32) - A

    # strided conv: down[b,t] += T_j[b, t*CK + j - PAD]  (zero pad outside [0,L))
    Dsel = np.zeros((CK, BL, BL), np.float32)
    for j in range(CK):
        for b in range(B):
            for t in range(L1):
                s = t * CK + j - PAD
                if 0 <= s < L:
                    Dsel[j, b * L + t, b * L + s] = 1.0

    # isometric conv: iso[b,t] += T'_j[b, t + j - (L1-1)]  (left zero pad)
    Ssel = np.zeros((KISO, BL, BL), np.float32)
    for j in range(KISO):
        for b in range(B):
            for t in range(L1):
                s = t + j - (L1 - 1)
                if 0 <= s < L1:
                    Ssel[j, b * L + t, b * L + s] = 1.0

    # conv transpose: up[b, tau] = U_{tau%CK}[b, tau//CK]  (crop to L)
    Esel = np.zeros((CK, BL, BL), np.float32)
    for j in range(CK):
        for b in range(B):
            for tau in range(L):
                if tau % CK == j:
                    Esel[j, b * L + tau, b * L + tau // CK] = 1.0

    # filler-row safety: iso / convT assembly must never read rows t >= L1
    for b in range(B):
        assert not Ssel[:, :, b * L + L1:(b + 1) * L].any()
        assert not Esel[:, :, b * L + L1:(b + 1) * L].any()

    # hstack taps -> assembly constants acting on the (taps*BL, C) stacks
    dasm = np.concatenate([Dsel[j] for j in range(CK)], axis=1)     # (BL, CK*BL)
    sasm = np.concatenate([Ssel[j] for j in range(KISO)], axis=1)   # (BL, KISO*BL)
    easm = np.concatenate([Esel[j] for j in range(CK)], axis=1)     # (BL, CK*BL)

    # --- wide (tap-hstacked) weights, (C_in, C_out) per tap -------------------
    ng, nb = p['ng'], p['nb']
    wd_wide = jnp.concatenate([p['conv_w'][:, :, j].T for j in range(CK)], axis=1)
    wi_wide = jnp.concatenate([p['iso_w'][:, :, j].T for j in range(KISO)], axis=1)
    wt_wide = jnp.concatenate([p['ct_w'][:, :, j] for j in range(CK)], axis=1)
    wt_eff = ng[:, None] * wt_wide            # fold LN gamma into convT weights

    # convT per-row bias: ct bias + LN beta routed through the tap weight
    btap = jnp.stack([jnp.matmul(nb, p['ct_w'][:, :, j], precision=hi)
                      for j in range(CK)], axis=0)                   # (CK, C)
    bias_up_one = p['ct_b'][None, :] + btap[jnp.arange(L) % CK]      # (L, C)
    bias_up = jnp.tile(bias_up_one, (B, 1))                          # (BL, C)

    # merge 1x1 Conv2d with branch-LN affine folded in
    wm = p['merge_w'][:, :, 0, 0].T
    wm_eff = ng[:, None] * wm
    bm_eff = p['merge_b'] + jnp.matmul(nb, wm, precision=hi)

    # FFN: conv1 @ conv2 folded (no activation in between), norm1 affine folded
    W1 = p['c1_w'][:, :, 0].T                                        # (C, 4C)
    W2 = p['c2_w'][:, :, 0].T                                        # (4C, C)
    wff = jnp.matmul(W1, W2, precision=hi)                           # (C, C)
    wff_eff = p['n1g'][:, None] * wff
    bff = (jnp.matmul(p['c1_b'], W2, precision=hi) + p['c2_b']
           + jnp.matmul(p['n1b'], wff, precision=hi))

    # --- group by natural lane width (no in-kernel sub-width slicing) --------
    k32 = jnp.stack([jnp.asarray(kdec), wm_eff, wff_eff, bias_up], axis=0)    # (4,32,32)
    k128 = jnp.stack([jnp.asarray(dasm), jnp.asarray(easm),
                      wd_wide, wt_eff], axis=0)                               # (4,32,128)
    k160 = jnp.stack([jnp.asarray(sasm), wi_wide], axis=0)                    # (2,32,160)
    vecs = jnp.stack([p['conv_b'], p['iso_b'], bm_eff, bff,
                      p['n2g'], p['n2b']], axis=0)                            # (6, C)
    return k32, k128, k160, vecs


# ------------------------------ wrapper ---------------------------------------
def mic_forward(src, packed):
    k32, k128, k160, vecs = packed
    src_flat = src.reshape(BL, C)
    args = (src_flat, k32, k128, k160, vecs)

    def spec(a):
        return pl.BlockSpec(a.shape, lambda i, _n=a.ndim: (0,) * _n)

    out_flat = pl.pallas_call(
        mic_kernel,
        out_shape=jax.ShapeDtypeStruct((BL, C), jnp.float32),
        grid=(1,),
        in_specs=[spec(a) for a in args],
        out_specs=pl.BlockSpec((BL, C), lambda i: (0, 0)),
        compiler_params=pltpu.CompilerParams(dimension_semantics=("arbitrary",)),
    )(*args)
    return out_flat.reshape(B, L, C)


# ------------------------- deterministic parameters -------------------------
def init_params(key):
    ks = jax.random.split(key, 12)

    def w(k, shape, fan_in):
        return jax.random.normal(k, shape, jnp.float32) / jnp.sqrt(float(fan_in))

    p = {}
    # PyTorch-layout weights (shapes from MIC.__init__)
    p['conv_w'] = w(ks[0], (C, C, CK), C * CK)      # Conv1d(C, C, CK, pad=CK//2, stride=CK)
    p['conv_b'] = w(ks[1], (C,), C * CK)
    p['iso_w'] = w(ks[2], (C, C, KISO), C * KISO)   # isometric Conv1d(C, C, KISO)
    p['iso_b'] = w(ks[3], (C,), C * KISO)
    p['ct_w'] = w(ks[4], (C, C, CK), C * CK)        # ConvTranspose1d: (Cin, Cout, K)
    p['ct_b'] = w(ks[5], (C,), C * CK)
    p['merge_w'] = w(ks[6], (C, C, 1, 1), C)        # Conv2d(C, C, (1, 1))
    p['merge_b'] = w(ks[7], (C,), C)
    p['c1_w'] = w(ks[8], (C4, C, 1), C)             # Conv1d(C, 4C, 1)
    p['c1_b'] = w(ks[9], (C4,), C)
    p['c2_w'] = w(ks[10], (C, C4, 1), C4)           # Conv1d(4C, C, 1)
    p['c2_b'] = w(ks[11], (C,), C4)
    # LayerNorm affine params (perturbed from default to exercise the path)
    lnk = jax.random.split(jax.random.PRNGKey(1), 6)
    p['ng'] = 1.0 + 0.1 * jax.random.normal(lnk[0], (C,), jnp.float32)
    p['nb'] = 0.1 * jax.random.normal(lnk[1], (C,), jnp.float32)
    p['n1g'] = 1.0 + 0.1 * jax.random.normal(lnk[2], (C,), jnp.float32)
    p['n1b'] = 0.1 * jax.random.normal(lnk[3], (C,), jnp.float32)
    p['n2g'] = 1.0 + 0.1 * jax.random.normal(lnk[4], (C,), jnp.float32)
    p['n2b'] = 0.1 * jax.random.normal(lnk[5], (C,), jnp.float32)
    return p


# --------------------------- pure-JAX reference ------------------------------
def _layernorm_ref(x, g, b):
    mu = x.mean(-1, keepdims=True)
    var = ((x - mu) ** 2).mean(-1, keepdims=True)
    return (x - mu) / jnp.sqrt(var + EPS) * g + b


def mic_reference(src, p):
    hi = lax.Precision.HIGHEST
    front = jnp.repeat(src[:, :1, :], PF, axis=1)
    end = jnp.repeat(src[:, -1:, :], DK - 1 - PF, axis=1)
    padded = jnp.concatenate([front, src, end], axis=1)
    mm = jnp.mean(jnp.stack([padded[:, j:j + L, :] for j in range(DK)], 0), axis=0)
    x_in = src - mm
    xp = jnp.pad(x_in, ((0, 0), (PAD, PAD), (0, 0)))
    down = jnp.stack(
        [jnp.einsum('bjc,ocj->bo', xp[:, t * CK:t * CK + CK, :], p['conv_w'],
                    precision=hi) for t in range(L1)], axis=1) + p['conv_b']
    x1 = jnp.tanh(down)
    xc = jnp.concatenate([jnp.zeros((B, L1 - 1, C), jnp.float32), x1], axis=1)
    iso = jnp.stack(
        [jnp.einsum('bjc,ocj->bo', xc[:, t:t + KISO, :], p['iso_w'],
                    precision=hi) for t in range(L1)], axis=1) + p['iso_b']
    xiso = jnp.tanh(iso)
    xn = _layernorm_ref(xiso + x1, p['ng'], p['nb'])
    up = jnp.zeros((B, L1 * CK, C), jnp.float32)
    for t in range(L1):
        for j in range(CK):
            up = up.at[:, t * CK + j, :].set(
                jnp.einsum('bc,co->bo', xn[:, t, :], p['ct_w'][:, :, j],
                           precision=hi))
    xt = jnp.tanh(up + p['ct_b'])[:, :L, :]
    branch = _layernorm_ref(xt + x_in, p['ng'], p['nb'])
    mg = jnp.einsum('blc,oc->blo', branch, p['merge_w'][:, :, 0, 0],
                    precision=hi) + p['merge_b']
    y = _layernorm_ref(mg, p['n1g'], p['n1b'])
    h = jnp.einsum('blc,dc->bld', y, p['c1_w'][:, :, 0], precision=hi) + p['c1_b']
    y2 = jnp.einsum('bld,od->blo', h, p['c2_w'][:, :, 0], precision=hi) + p['c2_b']
    return _layernorm_ref(mg + y2, p['n2g'], p['n2b'])


if __name__ == "__main__":
    key = jax.random.PRNGKey(0)
    k_src, k_par = jax.random.split(key)
    src = jax.random.normal(k_src, (B, L, C), jnp.float32)
    params = init_params(k_par)
    packed = pack_params(params)

    out = jax.block_until_ready(mic_forward(src, packed))
    assert out.shape == (B, L, C)
    assert bool(jnp.all(jnp.isfinite(out)))

    ref = mic_reference(src, params)
    err = float(jnp.max(jnp.abs(out - ref)))
    assert err < 2e-2, f"max abs err {err}"
    print("KERNEL_OK")
</pallas_src>

<mosaic_0001>
module attributes {stable_mosaic.version = 11 : i64} {
  func.func @mic_kernel(%arg0: i32, %arg1: memref<32x32xf32, #tpu.memory_space<vmem>>, %arg2: memref<4x32x32xf32, #tpu.memory_space<vmem>>, %arg3: memref<4x32x128xf32, #tpu.memory_space<vmem>>, %arg4: memref<2x32x160xf32, #tpu.memory_space<vmem>>, %arg5: memref<6x32xf32, #tpu.memory_space<vmem>>, %arg6: memref<32x32xf32, #tpu.memory_space<vmem>>) attributes {dimension_semantics = [#tpu.dimension_semantics<arbitrary>], iteration_bounds = array<i64: 1>, scalar_prefetch = 0 : i64, scratch_operands = 0 : i64, tpu.core_type = #tpu.core_type<tc>, window_params = [{pipeline_mode = #tpu.pipeline_mode<synchronous>, transform_indices = @transform_0, window_bounds = array<i64: 32, 32>}, {pipeline_mode = #tpu.pipeline_mode<synchronous>, transform_indices = @transform_1, window_bounds = array<i64: 4, 32, 32>}, {pipeline_mode = #tpu.pipeline_mode<synchronous>, transform_indices = @transform_2, window_bounds = array<i64: 4, 32, 128>}, {pipeline_mode = #tpu.pipeline_mode<synchronous>, transform_indices = @transform_3, window_bounds = array<i64: 2, 32, 160>}, {pipeline_mode = #tpu.pipeline_mode<synchronous>, transform_indices = @transform_4, window_bounds = array<i64: 6, 32>}, {pipeline_mode = #tpu.pipeline_mode<synchronous>, transform_indices = @transform_5, window_bounds = array<i64: 32, 32>}]} {
    %c0 = arith.constant 0 : index
    %c0_0 = arith.constant 0 : index
    %0 = vector.load %arg1[%c0, %c0_0] : memref<32x32xf32, #tpu.memory_space<vmem>>, vector<32x32xf32>
    %c0_1 = arith.constant 0 : index
    %c0_2 = arith.constant 0 : index
    %c0_3 = arith.constant 0 : index
    %1 = vector.load %arg2[%c0_1, %c0_2, %c0_3] : memref<4x32x32xf32, #tpu.memory_space<vmem>>, vector<1x32x32xf32>
    %2 = vector.shape_cast %1 : vector<1x32x32xf32> to vector<32x32xf32>
    %c1 = arith.constant 1 : index
    %c0_4 = arith.constant 0 : index
    %c0_5 = arith.constant 0 : index
    %3 = vector.load %arg2[%c1, %c0_4, %c0_5] : memref<4x32x32xf32, #tpu.memory_space<vmem>>, vector<1x32x32xf32>
    %4 = vector.shape_cast %3 : vector<1x32x32xf32> to vector<32x32xf32>
    %c2 = arith.constant 2 : index
    %c0_6 = arith.constant 0 : index
    %c0_7 = arith.constant 0 : index
    %5 = vector.load %arg2[%c2, %c0_6, %c0_7] : memref<4x32x32xf32, #tpu.memory_space<vmem>>, vector<1x32x32xf32>
    %6 = vector.shape_cast %5 : vector<1x32x32xf32> to vector<32x32xf32>
    %c3 = arith.constant 3 : index
    %c0_8 = arith.constant 0 : index
    %c0_9 = arith.constant 0 : index
    %7 = vector.load %arg2[%c3, %c0_8, %c0_9] : memref<4x32x32xf32, #tpu.memory_space<vmem>>, vector<1x32x32xf32>
    %8 = vector.shape_cast %7 : vector<1x32x32xf32> to vector<32x32xf32>
    %c0_10 = arith.constant 0 : index
    %c0_11 = arith.constant 0 : index
    %c0_12 = arith.constant 0 : index
    %9 = vector.load %arg3[%c0_10, %c0_11, %c0_12] : memref<4x32x128xf32, #tpu.memory_space<vmem>>, vector<1x32x128xf32>
    %10 = vector.shape_cast %9 : vector<1x32x128xf32> to vector<32x128xf32>
    %c1_13 = arith.constant 1 : index
    %c0_14 = arith.constant 0 : index
    %c0_15 = arith.constant 0 : index
    %11 = vector.load %arg3[%c1_13, %c0_14, %c0_15] : memref<4x32x128xf32, #tpu.memory_space<vmem>>, vector<1x32x128xf32>
    %12 = vector.shape_cast %11 : vector<1x32x128xf32> to vector<32x128xf32>
    %c2_16 = arith.constant 2 : index
    %c0_17 = arith.constant 0 : index
    %c0_18 = arith.constant 0 : index
    %13 = vector.load %arg3[%c2_16, %c0_17, %c0_18] : memref<4x32x128xf32, #tpu.memory_space<vmem>>, vector<1x32x128xf32>
    %14 = vector.shape_cast %13 : vector<1x32x128xf32> to vector<32x128xf32>
    %c3_19 = arith.constant 3 : index
    %c0_20 = arith.constant 0 : index
    %c0_21 = arith.constant 0 : index
    %15 = vector.load %arg3[%c3_19, %c0_20, %c0_21] : memref<4x32x128xf32, #tpu.memory_space<vmem>>, vector<1x32x128xf32>
    %16 = vector.shape_cast %15 : vector<1x32x128xf32> to vector<32x128xf32>
    %c0_22 = arith.constant 0 : index
    %c0_23 = arith.constant 0 : index
    %c0_24 = arith.constant 0 : index
    %17 = vector.load %arg4[%c0_22, %c0_23, %c0_24] : memref<2x32x160xf32, #tpu.memory_space<vmem>>, vector<1x32x160xf32>
    %18 = vector.shape_cast %17 : vector<1x32x160xf32> to vector<32x160xf32>
    %c1_25 = arith.constant 1 : index
    %c0_26 = arith.constant 0 : index
    %c0_27 = arith.constant 0 : index
    %19 = vector.load %arg4[%c1_25, %c0_26, %c0_27] : memref<2x32x160xf32, #tpu.memory_space<vmem>>, vector<1x32x160xf32>
    %20 = vector.shape_cast %19 : vector<1x32x160xf32> to vector<32x160xf32>
    %c0_28 = arith.constant 0 : index
    %c0_29 = arith.constant 0 : index
    %21 = vector.load %arg5[%c0_28, %c0_29] : memref<6x32xf32, #tpu.memory_space<vmem>>, vector<6x32xf32>
    %22 = vector.extract_strided_slice %21 {offsets = [0, 0], sizes = [1, 32], strides = [1, 1]} : vector<6x32xf32> to vector<1x32xf32>
    %23 = vector.extract_strided_slice %21 {offsets = [1, 0], sizes = [1, 32], strides = [1, 1]} : vector<6x32xf32> to vector<1x32xf32>
    %24 = vector.extract_strided_slice %21 {offsets = [2, 0], sizes = [1, 32], strides = [1, 1]} : vector<6x32xf32> to vector<1x32xf32>
    %25 = vector.extract_strided_slice %21 {offsets = [3, 0], sizes = [1, 32], strides = [1, 1]} : vector<6x32xf32> to vector<1x32xf32>
    %26 = vector.extract_strided_slice %21 {offsets = [4, 0], sizes = [1, 32], strides = [1, 1]} : vector<6x32xf32> to vector<1x32xf32>
    %27 = vector.extract_strided_slice %21 {offsets = [5, 0], sizes = [1, 32], strides = [1, 1]} : vector<6x32xf32> to vector<1x32xf32>
    %cst = arith.constant dense<0.000000e+00> : vector<32x32xf32>
    %28 = tpu.matmul %2, %0, %cst {dimension_numbers = #tpu.dot_dimension_numbers<[1], [0], [0], [1], [0, 0, 1, 1], [], []>} : vector<32x32xf32>, vector<32x32xf32>, vector<32x32xf32> -> vector<32x32xf32>
    %cst_30 = arith.constant dense<0.000000e+00> : vector<32x128xf32>
    %29 = tpu.matmul %28, %14, %cst_30 {dimension_numbers = #tpu.dot_dimension_numbers<[1], [0], [0], [1], [0, 0, 1, 1], [], []>} : vector<32x32xf32>, vector<32x128xf32>, vector<32x128xf32> -> vector<32x128xf32>
    %30 = vector.extract_strided_slice %29 {offsets = [0, 0], sizes = [32, 32], strides = [1, 1]} : vector<32x128xf32> to vector<32x32xf32>
    %31 = vector.extract_strided_slice %29 {offsets = [0, 32], sizes = [32, 32], strides = [1, 1]} : vector<32x128xf32> to vector<32x32xf32>
    %32 = vector.extract_strided_slice %29 {offsets = [0, 64], sizes = [32, 32], strides = [1, 1]} : vector<32x128xf32> to vector<32x32xf32>
    %33 = vector.extract_strided_slice %29 {offsets = [0, 96], sizes = [32, 32], strides = [1, 1]} : vector<32x128xf32> to vector<32x32xf32>
    %34 = tpu.concatenate %30, %31, %32, %33 in 0 : vector<32x32xf32>, vector<32x32xf32>, vector<32x32xf32>, vector<32x32xf32> -> vector<128x32xf32>
    %cst_31 = arith.constant dense<0.000000e+00> : vector<32x32xf32>
    %35 = tpu.matmul %10, %34, %cst_31 {dimension_numbers = #tpu.dot_dimension_numbers<[1], [0], [0], [1], [0, 0, 1, 1], [], []>} : vector<32x128xf32>, vector<128x32xf32>, vector<32x32xf32> -> vector<32x32xf32>
    %36 = vector.broadcast %22 : vector<1x32xf32> to vector<32x32xf32>
    %37 = arith.addf %35, %36 : vector<32x32xf32>
    %38 = math.tanh %37 : vector<32x32xf32>
    %cst_32 = arith.constant dense<0.000000e+00> : vector<32x160xf32>
    %39 = tpu.matmul %38, %20, %cst_32 {dimension_numbers = #tpu.dot_dimension_numbers<[1], [0], [0], [1], [0, 0, 1, 1], [], []>} : vector<32x32xf32>, vector<32x160xf32>, vector<32x160xf32> -> vector<32x160xf32>
    %40 = vector.extract_strided_slice %39 {offsets = [0, 0], sizes = [32, 32], strides = [1, 1]} : vector<32x160xf32> to vector<32x32xf32>
    %41 = vector.extract_strided_slice %39 {offsets = [0, 32], sizes = [32, 32], strides = [1, 1]} : vector<32x160xf32> to vector<32x32xf32>
    %42 = vector.extract_strided_slice %39 {offsets = [0, 64], sizes = [32, 32], strides = [1, 1]} : vector<32x160xf32> to vector<32x32xf32>
    %43 = vector.extract_strided_slice %39 {offsets = [0, 96], sizes = [32, 32], strides = [1, 1]} : vector<32x160xf32> to vector<32x32xf32>
    %44 = vector.extract_strided_slice %39 {offsets = [0, 128], sizes = [32, 32], strides = [1, 1]} : vector<32x160xf32> to vector<32x32xf32>
    %45 = tpu.concatenate %40, %41, %42, %43, %44 in 0 : vector<32x32xf32>, vector<32x32xf32>, vector<32x32xf32>, vector<32x32xf32>, vector<32x32xf32> -> vector<160x32xf32>
    %cst_33 = arith.constant dense<0.000000e+00> : vector<32x32xf32>
    %46 = tpu.matmul %18, %45, %cst_33 {dimension_numbers = #tpu.dot_dimension_numbers<[1], [0], [0], [1], [0, 0, 1, 1], [], []>} : vector<32x160xf32>, vector<160x32xf32>, vector<32x32xf32> -> vector<32x32xf32>
    %47 = vector.broadcast %23 : vector<1x32xf32> to vector<32x32xf32>
    %48 = arith.addf %46, %47 : vector<32x32xf32>
    %49 = math.tanh %48 : vector<32x32xf32>
    %50 = arith.addf %49, %38 : vector<32x32xf32>
    %cst_34 = arith.constant dense<0.000000e+00> : vector<32xf32>
    %51 = vector.multi_reduction <add>, %50, %cst_34 [1] : vector<32x32xf32> to vector<32xf32>
    %52 = vector.shape_cast %51 : vector<32xf32> to vector<32x1xf32>
    %cst_35 = arith.constant 3.200000e+01 : f32
    %53 = vector.broadcast %cst_35 : f32 to vector<32x1xf32>
    %54 = arith.divf %52, %53 : vector<32x1xf32>
    %55 = arith.mulf %50, %50 : vector<32x32xf32>
    %cst_36 = arith.constant dense<0.000000e+00> : vector<32xf32>
    %56 = vector.multi_reduction <add>, %55, %cst_36 [1] : vector<32x32xf32> to vector<32xf32>
    %57 = vector.shape_cast %56 : vector<32xf32> to vector<32x1xf32>
    %cst_37 = arith.constant 3.200000e+01 : f32
    %58 = vector.broadcast %cst_37 : f32 to vector<32x1xf32>
    %59 = arith.divf %57, %58 : vector<32x1xf32>
    %60 = vector.broadcast %54 : vector<32x1xf32> to vector<32x32xf32>
    %61 = arith.subf %50, %60 : vector<32x32xf32>
    %62 = arith.mulf %54, %54 : vector<32x1xf32>
    %63 = arith.subf %59, %62 : vector<32x1xf32>
    %cst_38 = arith.constant 9.99999974E-6 : f32
    %64 = vector.broadcast %cst_38 : f32 to vector<32x1xf32>
    %65 = arith.addf %63, %64 : vector<32x1xf32>
    %66 = math.rsqrt %65 : vector<32x1xf32>
    %67 = vector.broadcast %66 : vector<32x1xf32> to vector<32x32xf32>
    %68 = arith.mulf %61, %67 : vector<32x32xf32>
    %cst_39 = arith.constant dense<0.000000e+00> : vector<32x128xf32>
    %69 = tpu.matmul %68, %16, %cst_39 {dimension_numbers = #tpu.dot_dimension_numbers<[1], [0], [0], [1], [0, 0, 1, 1], [], []>} : vector<32x32xf32>, vector<32x128xf32>, vector<32x128xf32> -> vector<32x128xf32>
    %70 = vector.extract_strided_slice %69 {offsets = [0, 0], sizes = [32, 32], strides = [1, 1]} : vector<32x128xf32> to vector<32x32xf32>
    %71 = vector.extract_strided_slice %69 {offsets = [0, 32], sizes = [32, 32], strides = [1, 1]} : vector<32x128xf32> to vector<32x32xf32>
    %72 = vector.extract_strided_slice %69 {offsets = [0, 64], sizes = [32, 32], strides = [1, 1]} : vector<32x128xf32> to vector<32x32xf32>
    %73 = vector.extract_strided_slice %69 {offsets = [0, 96], sizes = [32, 32], strides = [1, 1]} : vector<32x128xf32> to vector<32x32xf32>
    %74 = tpu.concatenate %70, %71, %72, %73 in 0 : vector<32x32xf32>, vector<32x32xf32>, vector<32x32xf32>, vector<32x32xf32> -> vector<128x32xf32>
    %cst_40 = arith.constant dense<0.000000e+00> : vector<32x32xf32>
    %75 = tpu.matmul %12, %74, %cst_40 {dimension_numbers = #tpu.dot_dimension_numbers<[1], [0], [0], [1], [0, 0, 1, 1], [], []>} : vector<32x128xf32>, vector<128x32xf32>, vector<32x32xf32> -> vector<32x32xf32>
    %76 = arith.addf %75, %8 : vector<32x32xf32>
    %77 = math.tanh %76 : vector<32x32xf32>
    %78 = arith.addf %77, %28 : vector<32x32xf32>
    %cst_41 = arith.constant dense<0.000000e+00> : vector<32xf32>
    %79 = vector.multi_reduction <add>, %78, %cst_41 [1] : vector<32x32xf32> to vector<32xf32>
    %80 = vector.shape_cast %79 : vector<32xf32> to vector<32x1xf32>
    %cst_42 = arith.constant 3.200000e+01 : f32
    %81 = vector.broadcast %cst_42 : f32 to vector<32x1xf32>
    %82 = arith.divf %80, %81 : vector<32x1xf32>
    %83 = arith.mulf %78, %78 : vector<32x32xf32>
    %cst_43 = arith.constant dense<0.000000e+00> : vector<32xf32>
    %84 = vector.multi_reduction <add>, %83, %cst_43 [1] : vector<32x32xf32> to vector<32xf32>
    %85 = vector.shape_cast %84 : vector<32xf32> to vector<32x1xf32>
    %cst_44 = arith.constant 3.200000e+01 : f32
    %86 = vector.broadcast %cst_44 : f32 to vector<32x1xf32>
    %87 = arith.divf %85, %86 : vector<32x1xf32>
    %88 = vector.broadcast %82 : vector<32x1xf32> to vector<32x32xf32>
    %89 = arith.subf %78, %88 : vector<32x32xf32>
    %90 = arith.mulf %82, %82 : vector<32x1xf32>
    %91 = arith.subf %87, %90 : vector<32x1xf32>
    %cst_45 = arith.constant 9.99999974E-6 : f32
    %92 = vector.broadcast %cst_45 : f32 to vector<32x1xf32>
    %93 = arith.addf %91, %92 : vector<32x1xf32>
    %94 = math.rsqrt %93 : vector<32x1xf32>
    %95 = vector.broadcast %94 : vector<32x1xf32> to vector<32x32xf32>
    %96 = arith.mulf %89, %95 : vector<32x32xf32>
    %cst_46 = arith.constant dense<0.000000e+00> : vector<32x32xf32>
    %97 = tpu.matmul %96, %4, %cst_46 {dimension_numbers = #tpu.dot_dimension_numbers<[1], [0], [0], [1], [0, 0, 1, 1], [], []>} : vector<32x32xf32>, vector<32x32xf32>, vector<32x32xf32> -> vector<32x32xf32>
    %98 = vector.broadcast %24 : vector<1x32xf32> to vector<32x32xf32>
    %99 = arith.addf %97, %98 : vector<32x32xf32>
    %cst_47 = arith.constant dense<0.000000e+00> : vector<32xf32>
    %100 = vector.multi_reduction <add>, %99, %cst_47 [1] : vector<32x32xf32> to vector<32xf32>
    %101 = vector.shape_cast %100 : vector<32xf32> to vector<32x1xf32>
    %cst_48 = arith.constant 3.200000e+01 : f32
    %102 = vector.broadcast %cst_48 : f32 to vector<32x1xf32>
    %103 = arith.divf %101, %102 : vector<32x1xf32>
    %104 = arith.mulf %99, %99 : vector<32x32xf32>
    %cst_49 = arith.constant dense<0.000000e+00> : vector<32xf32>
    %105 = vector.multi_reduction <add>, %104, %cst_49 [1] : vector<32x32xf32> to vector<32xf32>
    %106 = vector.shape_cast %105 : vector<32xf32> to vector<32x1xf32>
    %cst_50 = arith.constant 3.200000e+01 : f32
    %107 = vector.broadcast %cst_50 : f32 to vector<32x1xf32>
    %108 = arith.divf %106, %107 : vector<32x1xf32>
    %109 = vector.broadcast %103 : vector<32x1xf32> to vector<32x32xf32>
    %110 = arith.subf %99, %109 : vector<32x32xf32>
    %111 = arith.mulf %103, %103 : vector<32x1xf32>
    %112 = arith.subf %108, %111 : vector<32x1xf32>
    %cst_51 = arith.constant 9.99999974E-6 : f32
    %113 = vector.broadcast %cst_51 : f32 to vector<32x1xf32>
    %114 = arith.addf %112, %113 : vector<32x1xf32>
    %115 = math.rsqrt %114 : vector<32x1xf32>
    %116 = vector.broadcast %115 : vector<32x1xf32> to vector<32x32xf32>
    %117 = arith.mulf %110, %116 : vector<32x32xf32>
    %cst_52 = arith.constant dense<0.000000e+00> : vector<32x32xf32>
    %118 = tpu.matmul %117, %6, %cst_52 {dimension_numbers = #tpu.dot_dimension_numbers<[1], [0], [0], [1], [0, 0, 1, 1], [], []>} : vector<32x32xf32>, vector<32x32xf32>, vector<32x32xf32> -> vector<32x32xf32>
    %119 = vector.broadcast %25 : vector<1x32xf32> to vector<32x32xf32>
    %120 = arith.addf %118, %119 : vector<32x32xf32>
    %121 = arith.addf %99, %120 : vector<32x32xf32>
    %cst_53 = arith.constant dense<0.000000e+00> : vector<32xf32>
    %122 = vector.multi_reduction <add>, %121, %cst_53 [1] : vector<32x32xf32> to vector<32xf32>
    %123 = vector.shape_cast %122 : vector<32xf32> to vector<32x1xf32>
    %cst_54 = arith.constant 3.200000e+01 : f32
    %124 = vector.broadcast %cst_54 : f32 to vector<32x1xf32>
    %125 = arith.divf %123, %124 : vector<32x1xf32>
    %126 = arith.mulf %121, %121 : vector<32x32xf32>
    %cst_55 = arith.constant dense<0.000000e+00> : vector<32xf32>
    %127 = vector.multi_reduction <add>, %126, %cst_55 [1] : vector<32x32xf32> to vector<32xf32>
    %128 = vector.shape_cast %127 : vector<32xf32> to vector<32x1xf32>
    %cst_56 = arith.constant 3.200000e+01 : f32
    %129 = vector.broadcast %cst_56 : f32 to vector<32x1xf32>
    %130 = arith.divf %128, %129 : vector<32x1xf32>
    %131 = vector.broadcast %125 : vector<32x1xf32> to vector<32x32xf32>
    %132 = arith.subf %121, %131 : vector<32x32xf32>
    %133 = arith.mulf %125, %125 : vector<32x1xf32>
    %134 = arith.subf %130, %133 : vector<32x1xf32>
    %cst_57 = arith.constant 9.99999974E-6 : f32
    %135 = vector.broadcast %cst_57 : f32 to vector<32x1xf32>
    %136 = arith.addf %134, %135 : vector<32x1xf32>
    %137 = math.rsqrt %136 : vector<32x1xf32>
    %138 = vector.broadcast %137 : vector<32x1xf32> to vector<32x32xf32>
    %139 = arith.mulf %132, %138 : vector<32x32xf32>
    %140 = vector.broadcast %26 : vector<1x32xf32> to vector<32x32xf32>
    %141 = arith.mulf %139, %140 : vector<32x32xf32>
    %142 = vector.broadcast %27 : vector<1x32xf32> to vector<32x32xf32>
    %143 = arith.addf %141, %142 : vector<32x32xf32>
    %c0_58 = arith.constant 0 : index
    %c0_59 = arith.constant 0 : index
    %144 = vector.load %arg6[%c0_58, %c0_59] : memref<32x32xf32, #tpu.memory_space<vmem>>, vector<32x32xf32>
    tpu.vector_store %arg6[%c0_58, %c0_59], %143 {strides = array<i32>} : memref<32x32xf32, #tpu.memory_space<vmem>>, vector<32x32xf32>,
    return
  }
  func.func @transform_0(%arg0: i32) -> (i32, i32) {
    %c0_i32 = arith.constant 0 : i32
    %c0_i32_0 = arith.constant 0 : i32
    %c0_i32_1 = arith.constant 0 : i32
    return %c0_i32, %c0_i32_0 : i32, i32
  }
  func.func @transform_1(%arg0: i32) -> (i32, i32, i32) {
    %c0_i32 = arith.constant 0 : i32
    %c0_i32_0 = arith.constant 0 : i32
    %c0_i32_1 = arith.constant 0 : i32
    %c0_i32_2 = arith.constant 0 : i32
    return %c0_i32, %c0_i32_0, %c0_i32_1 : i32, i32, i32
  }
  func.func @transform_2(%arg0: i32) -> (i32, i32, i32) {
    %c0_i32 = arith.constant 0 : i32
    %c0_i32_0 = arith.constant 0 : i32
    %c0_i32_1 = arith.constant 0 : i32
    %c0_i32_2 = arith.constant 0 : i32
    return %c0_i32, %c0_i32_0, %c0_i32_1 : i32, i32, i32
  }
  func.func @transform_3(%arg0: i32) -> (i32, i32, i32) {
    %c0_i32 = arith.constant 0 : i32
    %c0_i32_0 = arith.constant 0 : i32
    %c0_i32_1 = arith.constant 0 : i32
    %c0_i32_2 = arith.constant 0 : i32
    return %c0_i32, %c0_i32_0, %c0_i32_1 : i32, i32, i32
  }
  func.func @transform_4(%arg0: i32) -> (i32, i32) {
    %c0_i32 = arith.constant 0 : i32
    %c0_i32_0 = arith.constant 0 : i32
    %c0_i32_1 = arith.constant 0 : i32
    return %c0_i32, %c0_i32_0 : i32, i32
  }
  func.func @transform_5(%arg0: i32) -> (i32, i32) {
    %c0_i32 = arith.constant 0 : i32
    %c0_i32_0 = arith.constant 0 : i32
    %c0_i32_1 = arith.constant 0 : i32
    return %c0_i32, %c0_i32_0 : i32, i32
  }
}

</mosaic_0001>

<llo_original>
// kernel: tpu_custom_call.1
$region0: #{tpu_custom_call.1}
  #allocation0 [shape = 'u32[]', space=smem, size = 0x4, offset = 0x4, fixed_abs, tag = 'smem constant byte address 0x4 - core index']
  #allocation1 [shape = 'u32[72,128]{1,0:T(1,128)}', space=vmem, size = 0x9000, scoped, tag = 'internal scratch']
  %s0 = inlined_call_operand.hbm [shape: f32[32,32], index: 0, kind: input, shape index: {}]
  %s1 = inlined_call_operand.hbm [shape: f32[4,32,32], index: 1, kind: input, shape index: {}]
  %s2 = inlined_call_operand.hbm [shape: f32[4,32,128], index: 2, kind: input, shape index: {}]
  %s3 = inlined_call_operand.hbm [shape: f32[2,32,160], index: 3, kind: input, shape index: {}]
  %s4 = inlined_call_operand.hbm [shape: f32[6,32], index: 4, kind: input, shape index: {}]
  %s5 = inlined_call_operand.hbm [shape: f32[32,32], index: 5, kind: output, shape index: {}]
  %s6 = sld [smem:[#allocation0]]
  $region50: #{tpu_custom_call.1} parent=0
    _
  %s8 = ssub.s32 1, %s6
  %s9 = scalar_select 0, %s8, %s6
  $region1: #{tpu_custom_call.1} parent=0
    #allocation2 [shape = 'u8[16384]{0}', space=vmem, size = 0x4000, scoped, tag = 'input window, operand 0, single buffered']
    #allocation3 [shape = 's32[1]{0}', space=sflag, size = 0x4, scoped, tag = 'scoped memory for tpu_custom_call.1']
    #allocation4 [shape = 's32[1]{0}', space=sflag, size = 0x4, scoped, tag = 'scoped memory for tpu_custom_call.1']
    #allocation5 [shape = 'u8[65536]{0}', space=vmem, size = 0x10000, scoped, tag = 'input window, operand 1, single buffered']
    #allocation6 [shape = 's32[1]{0}', space=sflag, size = 0x4, scoped, tag = 'scoped memory for tpu_custom_call.1']
    #allocation7 [shape = 'u8[65536]{0}', space=vmem, size = 0x10000, scoped, tag = 'input window, operand 2, single buffered']
    #allocation8 [shape = 'u8[65536]{0}', space=vmem, size = 0x10000, scoped, tag = 'input window, operand 3, single buffered']
    #allocation9 [shape = 's32[1]{0}', space=sflag, size = 0x4, scoped, tag = 'scoped memory for tpu_custom_call.1']
    #allocation10 [shape = 'u8[4096]{0}', space=vmem, size = 0x1000, scoped, tag = 'input window, operand 4, single buffered']
    #allocation11 [shape = 'u8[16384]{0}', space=vmem, size = 0x4000, scoped, tag = 'output window, operand 0, single buffered']
    %10 = vsyncpa [#allocation3], 0
    %11 = vsyncpa [#allocation6], 0
    %12 = vsyncpa [#allocation9], 0
    %13 = vsyncpa [#allocation4], 0
    // Predicated region
    $region2: #{tpu_custom_call.1} parent=1 // pred_check
      _
    $region3: #{tpu_custom_call.1} parent=1 // pred_check_branch
      %15 = sbr.rel (0) target = $region5
    $region4: #{tpu_custom_call.1} parent=1 // pred_region
      %17 = vsyncadd [#allocation3], 0
      %s18 = sshll.u32 %s0, 4
      %s19 = int_to_ptr.hbm [resolvable:$true] %s18
      %s20 = sshll.u32 [#allocation2], 4
      %s21 = int_to_ptr.vmem [resolvable:$true] %s20
      %26 = dma.hbm_to_vmem [thread:$0]  %s19, 512, %s21, [#allocation3], 128, 128, 8
    $region5: #{tpu_custom_call.1} parent=1 // pred_fallthru
      _
    // Predicated region
    $region6: #{tpu_custom_call.1} parent=1 // pred_check
      _
    $region7: #{tpu_custom_call.1} parent=1 // pred_check_branch
      %28 = sbr.rel (0) target = $region9
    $region8: #{tpu_custom_call.1} parent=1 // pred_region
      %30 = vsyncadd [#allocation6], 0
      %s31 = sshll.u32 %s1, 4
      %s32 = int_to_ptr.hbm [resolvable:$true] %s31
      %s33 = sshll.u32 [#allocation5], 4
      %s34 = int_to_ptr.vmem [resolvable:$true] %s33
      %39 = dma.hbm_to_vmem [thread:$0]  %s32, 2048, %s34, [#allocation6], 128, 128, 8
    $region9: #{tpu_custom_call.1} parent=1 // pred_fallthru
      _
    // Predicated region
    $region10: #{tpu_custom_call.1} parent=1 // pred_check
      _
    $region11: #{tpu_custom_call.1} parent=1 // pred_check_branch
      %41 = sbr.rel (0) target = $region13
    $region12: #{tpu_custom_call.1} parent=1 // pred_region
      %43 = vsyncadd [#allocation6], 0
      %s44 = sshll.u32 %s2, 4
      %s45 = int_to_ptr.hbm [resolvable:$true] %s44
      %s46 = sshll.u32 [#allocation7], 4
      %s47 = int_to_ptr.vmem [resolvable:$true] %s46
      %52 = dma.hbm_to_vmem [thread:$0]  %s45, 2048, %s47, [#allocation6], 128, 128, 8
    $region13: #{tpu_custom_call.1} parent=1 // pred_fallthru
      _
    // Predicated region
    $region14: #{tpu_custom_call.1} parent=1 // pred_check
      _
    $region15: #{tpu_custom_call.1} parent=1 // pred_check_branch
      %54 = sbr.rel (0) target = $region17
    $region16: #{tpu_custom_call.1} parent=1 // pred_region
      %56 = vsyncadd [#allocation9], 0
      %s57 = sshll.u32 %s3, 4
      %s58 = int_to_ptr.hbm [resolvable:$true] %s57
      %s59 = sshll.u32 [#allocation8], 4
      %s60 = int_to_ptr.vmem [resolvable:$true] %s59
      %65 = dma.hbm_to_vmem [thread:$0]  %s58, 2048, %s60, [#allocation9], 256, 256, 16
    $region17: #{tpu_custom_call.1} parent=1 // pred_fallthru
      _
    // Predicated region
    $region18: #{tpu_custom_call.1} parent=1 // pred_check
      _
    $region19: #{tpu_custom_call.1} parent=1 // pred_check_branch
      %67 = sbr.rel (0) target = $region21
    $region20: #{tpu_custom_call.1} parent=1 // pred_region
      %69 = vsyncadd [#allocation9], 0
      %s71 = sshll.u32 %s4, 4
      %s72 = int_to_ptr.hbm [resolvable:$true] %s71
      %s73 = sshll.u32 [#allocation10], 4
      %s74 = int_to_ptr.vmem [resolvable:$true] %s73
      %76 = dma.hbm_to_vmem [thread:$0]  %s72, 128, %s74, [#allocation9]
    $region21: #{tpu_custom_call.1} parent=1 // pred_fallthru
      _
    // Predicated region
    $region22: #{tpu_custom_call.1} parent=1 // pred_check
      _
    $region23: #{tpu_custom_call.1} parent=1 // pred_check_branch
      %78 = sbr.rel (0) target = $region25
    $region24: #{tpu_custom_call.1} parent=1 // pred_region
      %80 = dma.done [#allocation3], 512
    $region25: #{tpu_custom_call.1} parent=1 // pred_fallthru
      _
    // Predicated region
    $region26: #{tpu_custom_call.1} parent=1 // pred_check
      _
    $region27: #{tpu_custom_call.1} parent=1 // pred_check_branch
      %82 = sbr.rel (0) target = $region29
    $region28: #{tpu_custom_call.1} parent=1 // pred_region
      %84 = dma.done [#allocation6], 2048
    $region29: #{tpu_custom_call.1} parent=1 // pred_fallthru
      _
    // Predicated region
    $region30: #{tpu_custom_call.1} parent=1 // pred_check
      _
    $region31: #{tpu_custom_call.1} parent=1 // pred_check_branch
      %86 = sbr.rel (0) target = $region33
    $region32: #{tpu_custom_call.1} parent=1 // pred_region
      %88 = dma.done [#allocation6], 2048
    $region33: #{tpu_custom_call.1} parent=1 // pred_fallthru
      _
    // Predicated region
    $region34: #{tpu_custom_call.1} parent=1 // pred_check
      _
    $region35: #{tpu_custom_call.1} parent=1 // pred_check_branch
      %90 = sbr.rel (0) target = $region37
    $region36: #{tpu_custom_call.1} parent=1 // pred_region
      %92 = dma.done [#allocation9], 2048
    $region37: #{tpu_custom_call.1} parent=1 // pred_fallthru
      _
    // Predicated region
    $region38: #{tpu_custom_call.1} parent=1 // pred_check
      _
    $region39: #{tpu_custom_call.1} parent=1 // pred_check_branch
      %94 = sbr.rel (0) target = $region41
    $region40: #{tpu_custom_call.1} parent=1 // pred_region
      %96 = dma.done [#allocation9], 128
    $region41: #{tpu_custom_call.1} parent=1 // pred_fallthru
      _
    %v97 = vld [vmem:[#allocation2] sm:$0xff]
    %v98 = vld [vmem:[#allocation2 + $0x8] sm:$0xff]
    %v99 = vld [vmem:[#allocation2 + $0x10] sm:$0xff]
    %v100 = vld [vmem:[#allocation2 + $0x18] sm:$0xff]
    %v101 = vld [vmem:[#allocation5] sm:$0xff]
    %v102 = vld [vmem:[#allocation5 + $0x8] sm:$0xff]
    %v103 = vld [vmem:[#allocation5 + $0x10] sm:$0xff]
    %v104 = vld [vmem:[#allocation5 + $0x18] sm:$0xff]
    %s105 = scalar_lea.vmem [#allocation5], 32
    %v106 = vld [vmem:[%s105] sm:$0xff]
    %v107 = vld [vmem:[%s105 + $0x8] sm:$0xff]
    %v108 = vld [vmem:[%s105 + $0x10] sm:$0xff]
    %v109 = vld [vmem:[%s105 + $0x18] sm:$0xff]
    %s110 = scalar_lea.vmem [#allocation5], 64
    %v111 = vld [vmem:[%s110] sm:$0xff]
    %v112 = vld [vmem:[%s110 + $0x8] sm:$0xff]
    %v113 = vld [vmem:[%s110 + $0x10] sm:$0xff]
    %v114 = vld [vmem:[%s110 + $0x18] sm:$0xff]
    %s115 = scalar_lea.vmem [#allocation5], 96
    %v116 = vld [vmem:[%s115] sm:$0xff]
    %v117 = vld [vmem:[%s115 + $0x8] sm:$0xff]
    %v118 = vld [vmem:[%s115 + $0x10] sm:$0xff]
    %v119 = vld [vmem:[%s115 + $0x18] sm:$0xff]
    %v120 = vld [vmem:[#allocation7] sm:$0xff]
    %v121 = vld [vmem:[#allocation7 + $0x8] sm:$0xff]
    %v122 = vld [vmem:[#allocation7 + $0x10] sm:$0xff]
    %v123 = vld [vmem:[#allocation7 + $0x18] sm:$0xff]
    %s124 = scalar_lea.vmem [#allocation7], 32
    %v125 = vld [vmem:[%s124] sm:$0xff]
    %v126 = vld [vmem:[%s124 + $0x8] sm:$0xff]
    %v127 = vld [vmem:[%s124 + $0x10] sm:$0xff]
    %v128 = vld [vmem:[%s124 + $0x18] sm:$0xff]
    %s129 = scalar_lea.vmem [#allocation7], 64
    %v130 = vld [vmem:[%s129] sm:$0xff]
    %v131 = vld [vmem:[%s129 + $0x8] sm:$0xff]
    %v132 = vld [vmem:[%s129 + $0x10] sm:$0xff]
    %v133 = vld [vmem:[%s129 + $0x18] sm:$0xff]
    %s134 = scalar_lea.vmem [#allocation7], 96
    %v135 = vld [vmem:[%s134] sm:$0xff]
    %v136 = vld [vmem:[%s134 + $0x8] sm:$0xff]
    %v137 = vld [vmem:[%s134 + $0x10] sm:$0xff]
    %v138 = vld [vmem:[%s134 + $0x18] sm:$0xff]
    %v139 = vld [vmem:[#allocation8] sm:$0xff]
    %v140 = vld [vmem:[#allocation8 + $0x8] sm:$0xff]
    %v141 = vld [vmem:[#allocation8 + $0x10] sm:$0xff]
    %v142 = vld [vmem:[#allocation8 + $0x18] sm:$0xff]
    %v143 = vld [vmem:[#allocation8 + $0x20] sm:$0xff]
    %v144 = vld [vmem:[#allocation8 + $0x28] sm:$0xff]
    %v145 = vld [vmem:[#allocation8 + $0x30] sm:$0xff]
    %v146 = vld [vmem:[#allocation8 + $0x38] sm:$0xff]
    %s147 = scalar_lea.vmem [#allocation8], 64
    %v148 = vld [vmem:[%s147] sm:$0xff]
    %v149 = vld [vmem:[%s147 + $0x8] sm:$0xff]
    %v150 = vld [vmem:[%s147 + $0x10] sm:$0xff]
    %v151 = vld [vmem:[%s147 + $0x18] sm:$0xff]
    %v152 = vld [vmem:[%s147 + $0x20] sm:$0xff]
    %v153 = vld [vmem:[%s147 + $0x28] sm:$0xff]
    %v154 = vld [vmem:[%s147 + $0x30] sm:$0xff]
    %v155 = vld [vmem:[%s147 + $0x38] sm:$0xff]
    %v156 = vld [vmem:[#allocation10] sm:$0x3f]
    %vm157 = vcmask 261120
    %v159 = vsel %vm157, %v101, 0
    %v162 = vsel %vm157, %v102, 0
    %v165 = vsel %vm157, %v103, 0
    %v168 = vsel %vm157, %v104, 0
    %170 = vmatpush.msra.mxu0 0.0
    %171 = vmatpush.msra.mxu0 0.0
    %172 = vmatpush.msra.mxu0 0.0
    %173 = vmatpush.msra.mxu0 0.0
    %174 = vmatpush.msra.mxu0 0.0
    %175 = vmatpush.msra.mxu0 0.0
    %176 = vmatpush.msra.mxu0 0.0
    %177 = vmatpush.msra.mxu0 0.0
    %178 = vmatpush.msra.mxu0 0.0
    %179 = vmatpush.msra.mxu0 0.0
    %180 = vmatpush.msra.mxu0 0.0
    %181 = vmatpush.msra.mxu0 0.0
    %182 = vmatpush.msra.mxu0 %v100
    %183 = vmatpush.msra.mxu0 %v99
    %184 = vmatpush.msra.mxu0 %v98
    %185 = vmatpush.msra.mxu0 %v97
    %186 = vmatmul.f32.gmra.mxu0 %v159
    %v187 = vpop.f32.mrf.mxu0
    %v188 = vadd.f32 0.0, %v187
    %189 = vmatmul.f32.gmra.mxu0 %v162
    %v190 = vpop.f32.mrf.mxu0
    %v191 = vadd.f32 0.0, %v190
    %192 = vmatmul.f32.gmra.mxu0 %v165
    %v193 = vpop.f32.mrf.mxu0
    %v194 = vadd.f32 0.0, %v193
    %195 = vmatmul.f32.gmra.mxu0 %v168
    %v196 = vpop.f32.mrf.mxu0
    %v197 = vadd.f32 0.0, %v196
    %198 = vdwg.mxu0
    %v200 = vsel %vm157, %v188, 0
    %v203 = vsel %vm157, %v191, 0
    %v206 = vsel %vm157, %v194, 0
    %v209 = vsel %vm157, %v197, 0
    %211 = vmatpush.msra.mxu0 0.0
    %212 = vmatpush.msra.mxu0 0.0
    %213 = vmatpush.msra.mxu0 0.0
    %214 = vmatpush.msra.mxu0 0.0
    %215 = vmatpush.msra.mxu0 0.0
    %216 = vmatpush.msra.mxu0 0.0
    %217 = vmatpush.msra.mxu0 0.0
    %218 = vmatpush.msra.mxu0 0.0
    %219 = vmatpush.msra.mxu0 0.0
    %220 = vmatpush.msra.mxu0 0.0
    %221 = vmatpush.msra.mxu0 0.0
    %222 = vmatpush.msra.mxu0 0.0
    %223 = vmatpush.msra.mxu0 %v133
    %224 = vmatpush.msra.mxu0 %v132
    %225 = vmatpush.msra.mxu0 %v131
    %226 = vmatpush.msra.mxu0 %v130
    %227 = vmatmul.f32.gmra.mxu0 %v200
    %v228 = vpop.f32.mrf.mxu0
    %v229 = vadd.f32 0.0, %v228
    %230 = vmatmul.f32.gmra.mxu0 %v203
    %v231 = vpop.f32.mrf.mxu0
    %v232 = vadd.f32 0.0, %v231
    %233 = vmatmul.f32.gmra.mxu0 %v206
    %v234 = vpop.f32.mrf.mxu0
    %v235 = vadd.f32 0.0, %v234
    %236 = vmatmul.f32.gmra.mxu0 %v209
    %v237 = vpop.f32.mrf.mxu0
    %v238 = vadd.f32 0.0, %v237
    %239 = vdwg.mxu0
    %244 = vrot.lane.b32.xlu0 %v229, 96
    %v245 = vpop.permute.xlu0 %244
    %246 = vrot.lane.b32.xlu0 %v232, 96
    %v247 = vpop.permute.xlu0 %246
    %248 = vrot.lane.b32.xlu0 %v235, 96
    %v249 = vpop.permute.xlu0 %248
    %250 = vrot.lane.b32.xlu0 %v238, 96
    %v251 = vpop.permute.xlu0 %250
    %256 = vrot.lane.b32.xlu0 %v229, 64
    %v257 = vpop.permute.xlu0 %256
    %258 = vrot.lane.b32.xlu0 %v232, 64
    %v259 = vpop.permute.xlu0 %258
    %260 = vrot.lane.b32.xlu0 %v235, 64
    %v261 = vpop.permute.xlu0 %260
    %262 = vrot.lane.b32.xlu0 %v238, 64
    %v263 = vpop.permute.xlu0 %262
    %268 = vrot.lane.b32.xlu0 %v229, 32
    %v269 = vpop.permute.xlu0 %268
    %270 = vrot.lane.b32.xlu0 %v232, 32
    %v271 = vpop.permute.xlu0 %270
    %272 = vrot.lane.b32.xlu0 %v235, 32
    %v273 = vpop.permute.xlu0 %272
    %274 = vrot.lane.b32.xlu0 %v238, 32
    %v275 = vpop.permute.xlu0 %274
    %v280 = vperm.slane %v156, 0
    %281 = vmatpush.msra.mxu0 %v275
    %282 = vmatpush.msra.mxu0 %v273
    %283 = vmatpush.msra.mxu0 %v271
    %284 = vmatpush.msra.mxu0 %v269
    %285 = vmatpush.msra.mxu0 %v263
    %286 = vmatpush.msra.mxu0 %v261
    %287 = vmatpush.msra.mxu0 %v259
    %288 = vmatpush.msra.mxu0 %v257
    %289 = vmatpush.msra.mxu0 %v251
    %290 = vmatpush.msra.mxu0 %v249
    %291 = vmatpush.msra.mxu0 %v247
    %292 = vmatpush.msra.mxu0 %v245
    %293 = vmatpush.msra.mxu0 %v238
    %294 = vmatpush.msra.mxu0 %v235
    %295 = vmatpush.msra.mxu0 %v232
    %296 = vmatpush.msra.mxu0 %v229
    %297 = vmatmul.f32.gmra.mxu0 %v120
    %v298 = vpop.f32.mrf.mxu0
    %v299 = vadd.f32 %v280, %v298
    %300 = vmatmul.f32.gmra.mxu0 %v121
    %v301 = vpop.f32.mrf.mxu0
    %v302 = vadd.f32 %v280, %v301
    %303 = vmatmul.f32.gmra.mxu0 %v122
    %v304 = vpop.f32.mrf.mxu0
    %v305 = vadd.f32 %v280, %v304
    %306 = vmatmul.f32.gmra.mxu0 %v123
    %v307 = vpop.f32.mrf.mxu0
    %v308 = vadd.f32 %v280, %v307
    %309 = vdwg.mxu0
    %v310 = vtanh.pop %v299
    %v311 = vtanh.pop %v302
    %v312 = vtanh.pop %v305
    %v313 = vtanh.pop %v308
    %v315 = vsel %vm157, %v310, 0
    %v318 = vsel %vm157, %v311, 0
    %v321 = vsel %vm157, %v312, 0
    %v324 = vsel %vm157, %v313, 0
    %326 = vmatpush.msra.mxu0 0.0
    %327 = vmatpush.msra.mxu0 0.0
    %328 = vmatpush.msra.mxu0 0.0
    %329 = vmatpush.msra.mxu0 0.0
    %330 = vmatpush.msra.mxu0 0.0
    %331 = vmatpush.msra.mxu0 0.0
    %332 = vmatpush.msra.mxu0 0.0
    %333 = vmatpush.msra.mxu0 0.0
    %334 = vmatpush.msra.mxu0 0.0
    %335 = vmatpush.msra.mxu0 0.0
    %336 = vmatpush.msra.mxu0 0.0
    %337 = vmatpush.msra.mxu0 0.0
    %338 = vmatpush.msra.mxu0 %v154
    %339 = vmatpush.msra.mxu0 %v152
    %340 = vmatpush.msra.mxu0 %v150
    %341 = vmatpush.msra.mxu0 %v148
    %342 = vmatmul.f32.gmra.mxu0 %v315
    %v343 = vpop.f32.mrf.mxu0
    %v344 = vadd.f32 0.0, %v343
    %345 = vmatmul.f32.gmra.mxu0 %v318
    %v346 = vpop.f32.mrf.mxu0
    %v347 = vadd.f32 0.0, %v346
    %348 = vmatmul.f32.gmra.mxu0 %v321
    %v349 = vpop.f32.mrf.mxu0
    %v350 = vadd.f32 0.0, %v349
    %351 = vmatmul.f32.gmra.mxu0 %v324
    %v352 = vpop.f32.mrf.mxu0
    %v353 = vadd.f32 0.0, %v352
    %354 = vdwg.mxu0
    %355 = vmatpush.msra.mxu0 0.0
    %356 = vmatpush.msra.mxu0 0.0
    %357 = vmatpush.msra.mxu0 0.0
    %358 = vmatpush.msra.mxu0 0.0
    %359 = vmatpush.msra.mxu0 0.0
    %360 = vmatpush.msra.mxu0 0.0
    %361 = vmatpush.msra.mxu0 0.0
    %362 = vmatpush.msra.mxu0 0.0
    %363 = vmatpush.msra.mxu0 0.0
    %364 = vmatpush.msra.mxu0 0.0
    %365 = vmatpush.msra.mxu0 0.0
    %366 = vmatpush.msra.mxu0 0.0
    %367 = vmatpush.msra.mxu0 %v155
    %368 = vmatpush.msra.mxu0 %v153
    %369 = vmatpush.msra.mxu0 %v151
    %370 = vmatpush.msra.mxu0 %v149
    %371 = vmatmul.f32.gmra.mxu0 %v315
    %v372 = vpop.f32.mrf.mxu0
    %v373 = vadd.f32 0.0, %v372
    %374 = vmatmul.f32.gmra.mxu0 %v318
    %v375 = vpop.f32.mrf.mxu0
    %v376 = vadd.f32 0.0, %v375
    %377 = vmatmul.f32.gmra.mxu0 %v321
    %v378 = vpop.f32.mrf.mxu0
    %v379 = vadd.f32 0.0, %v378
    %380 = vmatmul.f32.gmra.mxu0 %v324
    %v381 = vpop.f32.mrf.mxu0
    %v382 = vadd.f32 0.0, %v381
    %383 = vdwg.mxu0
    %388 = vrot.lane.b32.xlu0 %v344, 96
    %v389 = vpop.permute.xlu0 %388
    %390 = vrot.lane.b32.xlu0 %v347, 96
    %v391 = vpop.permute.xlu0 %390
    %392 = vrot.lane.b32.xlu0 %v350, 96
    %v393 = vpop.permute.xlu0 %392
    %394 = vrot.lane.b32.xlu0 %v353, 96
    %v395 = vpop.permute.xlu0 %394
    %400 = vrot.lane.b32.xlu0 %v344, 64
    %v401 = vpop.permute.xlu0 %400
    %402 = vrot.lane.b32.xlu0 %v347, 64
    %v403 = vpop.permute.xlu0 %402
    %404 = vrot.lane.b32.xlu0 %v350, 64
    %v405 = vpop.permute.xlu0 %404
    %406 = vrot.lane.b32.xlu0 %v353, 64
    %v407 = vpop.permute.xlu0 %406
    %412 = vrot.lane.b32.xlu0 %v344, 32
    %v413 = vpop.permute.xlu0 %412
    %414 = vrot.lane.b32.xlu0 %v347, 32
    %v415 = vpop.permute.xlu0 %414
    %416 = vrot.lane.b32.xlu0 %v350, 32
    %v417 = vpop.permute.xlu0 %416
    %418 = vrot.lane.b32.xlu0 %v353, 32
    %v419 = vpop.permute.xlu0 %418
    %v424 = vperm.slane %v156, 1
    %v426 = vsel %vm157, %v140, 0
    %v429 = vsel %vm157, %v142, 0
    %v432 = vsel %vm157, %v144, 0
    %v435 = vsel %vm157, %v146, 0
    %437 = vmatpush.msra.mxu0 %v419
    %438 = vmatpush.msra.mxu0 %v417
    %439 = vmatpush.msra.mxu0 %v415
    %440 = vmatpush.msra.mxu0 %v413
    %441 = vmatpush.msra.mxu0 %v407
    %442 = vmatpush.msra.mxu0 %v405
    %443 = vmatpush.msra.mxu0 %v403
    %444 = vmatpush.msra.mxu0 %v401
    %445 = vmatpush.msra.mxu0 %v395
    %446 = vmatpush.msra.mxu0 %v393
    %447 = vmatpush.msra.mxu0 %v391
    %448 = vmatpush.msra.mxu0 %v389
    %449 = vmatpush.msra.mxu0 %v353
    %450 = vmatpush.msra.mxu0 %v350
    %451 = vmatpush.msra.mxu0 %v347
    %452 = vmatpush.msra.mxu0 %v344
    %453 = vmatmul.f32.gmra.mxu0 %v139
    %v454 = vpop.f32.mrf.mxu0
    %v455 = vadd.f32 %v424, %v454
    %456 = vmatmul.f32.gmra.mxu0 %v141
    %v457 = vpop.f32.mrf.mxu0
    %v458 = vadd.f32 %v424, %v457
    %459 = vmatmul.f32.gmra.mxu0 %v143
    %v460 = vpop.f32.mrf.mxu0
    %v461 = vadd.f32 %v424, %v460
    %462 = vmatmul.f32.gmra.mxu0 %v145
    %v463 = vpop.f32.mrf.mxu0
    %v464 = vadd.f32 %v424, %v463
    %465 = vdwg.mxu0
    %466 = vmatpush.msra.mxu0 0.0
    %467 = vmatpush.msra.mxu0 0.0
    %468 = vmatpush.msra.mxu0 0.0
    %469 = vmatpush.msra.mxu0 0.0
    %470 = vmatpush.msra.mxu0 0.0
    %471 = vmatpush.msra.mxu0 0.0
    %472 = vmatpush.msra.mxu0 0.0
    %473 = vmatpush.msra.mxu0 0.0
    %474 = vmatpush.msra.mxu0 0.0
    %475 = vmatpush.msra.mxu0 0.0
    %476 = vmatpush.msra.mxu0 0.0
    %477 = vmatpush.msra.mxu0 0.0
    %478 = vmatpush.msra.mxu0 %v382
    %479 = vmatpush.msra.mxu0 %v379
    %480 = vmatpush.msra.mxu0 %v376
    %481 = vmatpush.msra.mxu0 %v373
    %482 = vmatmul.f32.gmra.mxu0 %v426
    %v483 = vpop.f32.mrf.mxu0
    %v484 = vadd.f32 %v455, %v483
    %485 = vmatmul.f32.gmra.mxu0 %v429
    %v486 = vpop.f32.mrf.mxu0
    %v487 = vadd.f32 %v458, %v486
    %488 = vmatmul.f32.gmra.mxu0 %v432
    %v489 = vpop.f32.mrf.mxu0
    %v490 = vadd.f32 %v461, %v489
    %491 = vmatmul.f32.gmra.mxu0 %v435
    %v492 = vpop.f32.mrf.mxu0
    %v493 = vadd.f32 %v464, %v492
    %494 = vdwg.mxu0
    %v495 = vtanh.pop %v484
    %v496 = vtanh.pop %v487
    %v497 = vtanh.pop %v490
    %v498 = vtanh.pop %v493
    %v499 = vadd.f32 %v495, %v310
    %v500 = vadd.f32 %v496, %v311
    %v501 = vadd.f32 %v497, %v312
    %v502 = vadd.f32 %v498, %v313
    %v503 = vsel %vm157, %v499, 0.0
    %504 = vadd.xlane.f32.xlu0 %v503
    %v505 = vpop.xlane.xlu0 %504
    %v506 = vsel %vm157, %v500, 0.0
    %507 = vadd.xlane.f32.xlu0 %v506
    %v508 = vpop.xlane.xlu0 %507
    %v509 = vsel %vm157, %v501, 0.0
    %510 = vadd.xlane.f32.xlu0 %v509
    %v511 = vpop.xlane.xlu0 %510
    %v512 = vsel %vm157, %v502, 0.0
    %513 = vadd.xlane.f32.xlu0 %v512
    %v514 = vpop.xlane.xlu0 %513
    %v515 = vrcp.pop 32.0
    %v516 = vmul.f32 32.0, %v515
    %v517 = vsub.f32 1.0, %v516
    %v518 = vmul.f32 %v515, %v517
    %v519 = vadd.f32 %v515, %v518
    %vm520 = vweird.f32 %v515
    %v521 = vsel %vm520, %v515, %v519
    %v522 = vmul.f32 %v505, %v521
    %v523 = vmul.f32 %v508, %v521
    %v524 = vmul.f32 %v511, %v521
    %v525 = vmul.f32 %v514, %v521
    %v526 = vmul.f32 %v499, %v499
    %v527 = vmul.f32 %v500, %v500
    %v528 = vmul.f32 %v501, %v501
    %v529 = vmul.f32 %v502, %v502
    %v530 = vsel %vm157, %v526, 0.0
    %531 = vadd.xlane.f32.xlu0 %v530
    %v532 = vpop.xlane.xlu0 %531
    %v533 = vsel %vm157, %v527, 0.0
    %534 = vadd.xlane.f32.xlu0 %v533
    %v535 = vpop.xlane.xlu0 %534
    %v536 = vsel %vm157, %v528, 0.0
    %537 = vadd.xlane.f32.xlu0 %v536
    %v538 = vpop.xlane.xlu0 %537
    %v539 = vsel %vm157, %v529, 0.0
    %540 = vadd.xlane.f32.xlu0 %v539
    %v541 = vpop.xlane.xlu0 %540
    %v542 = vmul.f32 %v532, %v521
    %v543 = vmul.f32 %v535, %v521
    %v544 = vmul.f32 %v538, %v521
    %v545 = vmul.f32 %v541, %v521
    %v546 = vsub.f32 %v499, %v522
    %v547 = vsub.f32 %v500, %v523
    %v548 = vsub.f32 %v501, %v524
    %v549 = vsub.f32 %v502, %v525
    %v550 = vmul.f32 %v522, %v522
    %v551 = vmul.f32 %v523, %v523
    %v552 = vmul.f32 %v524, %v524
    %v553 = vmul.f32 %v525, %v525
    %v554 = vsub.f32 %v542, %v550
    %v555 = vsub.f32 %v543, %v551
    %v556 = vsub.f32 %v544, %v552
    %v557 = vsub.f32 %v545, %v553
    %v558 = vadd.f32 %v554, 1e-05
    %v559 = vadd.f32 %v555, 1e-05
    %v560 = vadd.f32 %v556, 1e-05
    %v561 = vadd.f32 %v557, 1e-05
    %v562 = vrsqrt.pop %v558
    %v563 = vmul.f32 %v562, %v558
    %v564 = vmul.f32 %v563, %v562
    %v565 = vmul.f32 0.5, %v564
    %v566 = vsub.f32 1.5, %v565
    %v567 = vmul.f32 %v562, %v566
    %vm568 = vweird.f32 %v558
    %vm569 = vweird.f32 %v562
    %vm570 = vmor %vm568, %vm569
    %v571 = vsel %vm570, %v562, %v567
    %v572 = vrsqrt.pop %v559
    %v573 = vmul.f32 %v572, %v559
    %v574 = vmul.f32 %v573, %v572
    %v575 = vmul.f32 0.5, %v574
    %v576 = vsub.f32 1.5, %v575
    %v577 = vmul.f32 %v572, %v576
    %vm578 = vweird.f32 %v559
    %vm579 = vweird.f32 %v572
    %vm580 = vmor %vm578, %vm579
    %v581 = vsel %vm580, %v572, %v577
    %v582 = vrsqrt.pop %v560
    %v583 = vmul.f32 %v582, %v560
    %v584 = vmul.f32 %v583, %v582
    %v585 = vmul.f32 0.5, %v584
    %v586 = vsub.f32 1.5, %v585
    %v587 = vmul.f32 %v582, %v586
    %vm588 = vweird.f32 %v560
    %vm589 = vweird.f32 %v582
    %vm590 = vmor %vm588, %vm589
    %v591 = vsel %vm590, %v582, %v587
    %v592 = vrsqrt.pop %v561
    %v593 = vmul.f32 %v592, %v561
    %v594 = vmul.f32 %v593, %v592
    %v595 = vmul.f32 0.5, %v594
    %v596 = vsub.f32 1.5, %v595
    %v597 = vmul.f32 %v592, %v596
    %vm598 = vweird.f32 %v561
    %vm599 = vweird.f32 %v592
    %vm600 = vmor %vm598, %vm599
    %v601 = vsel %vm600, %v592, %v597
    %v602 = vmul.f32 %v546, %v571
    %v603 = vmul.f32 %v547, %v581
    %v604 = vmul.f32 %v548, %v591
    %v605 = vmul.f32 %v549, %v601
    %v607 = vsel %vm157, %v602, 0
    %v610 = vsel %vm157, %v603, 0
    %v613 = vsel %vm157, %v604, 0
    %v616 = vsel %vm157, %v605, 0
    %618 = vmatpush.msra.mxu0 0.0
    %619 = vmatpush.msra.mxu0 0.0
    %620 = vmatpush.msra.mxu0 0.0
    %621 = vmatpush.msra.mxu0 0.0
    %622 = vmatpush.msra.mxu0 0.0
    %623 = vmatpush.msra.mxu0 0.0
    %624 = vmatpush.msra.mxu0 0.0
    %625 = vmatpush.msra.mxu0 0.0
    %626 = vmatpush.msra.mxu0 0.0
    %627 = vmatpush.msra.mxu0 0.0
    %628 = vmatpush.msra.mxu0 0.0
    %629 = vmatpush.msra.mxu0 0.0
    %630 = vmatpush.msra.mxu0 %v138
    %631 = vmatpush.msra.mxu0 %v137
    %632 = vmatpush.msra.mxu0 %v136
    %633 = vmatpush.msra.mxu0 %v135
    %634 = vmatmul.f32.gmra.mxu0 %v607
    %v635 = vpop.f32.mrf.mxu0
    %v636 = vadd.f32 0.0, %v635
    %637 = vmatmul.f32.gmra.mxu0 %v610
    %v638 = vpop.f32.mrf.mxu0
    %v639 = vadd.f32 0.0, %v638
    %640 = vmatmul.f32.gmra.mxu0 %v613
    %v641 = vpop.f32.mrf.mxu0
    %v642 = vadd.f32 0.0, %v641
    %643 = vmatmul.f32.gmra.mxu0 %v616
    %v644 = vpop.f32.mrf.mxu0
    %v645 = vadd.f32 0.0, %v644
    %646 = vdwg.mxu0
    %651 = vrot.lane.b32.xlu0 %v636, 96
    %v652 = vpop.permute.xlu0 %651
    %653 = vrot.lane.b32.xlu0 %v639, 96
    %v654 = vpop.permute.xlu0 %653
    %655 = vrot.lane.b32.xlu0 %v642, 96
    %v656 = vpop.permute.xlu0 %655
    %657 = vrot.lane.b32.xlu0 %v645, 96
    %v658 = vpop.permute.xlu0 %657
    %663 = vrot.lane.b32.xlu0 %v636, 64
    %v664 = vpop.permute.xlu0 %663
    %665 = vrot.lane.b32.xlu0 %v639, 64
    %v666 = vpop.permute.xlu0 %665
    %667 = vrot.lane.b32.xlu0 %v642, 64
    %v668 = vpop.permute.xlu0 %667
    %669 = vrot.lane.b32.xlu0 %v645, 64
    %v670 = vpop.permute.xlu0 %669
    %675 = vrot.lane.b32.xlu0 %v636, 32
    %v676 = vpop.permute.xlu0 %675
    %677 = vrot.lane.b32.xlu0 %v639, 32
    %v678 = vpop.permute.xlu0 %677
    %679 = vrot.lane.b32.xlu0 %v642, 32
    %v680 = vpop.permute.xlu0 %679
    %681 = vrot.lane.b32.xlu0 %v645, 32
    %v682 = vpop.permute.xlu0 %681
    %687 = vmatpush.msra.mxu0 %v682
    %688 = vmatpush.msra.mxu0 %v680
    %689 = vmatpush.msra.mxu0 %v678
    %690 = vmatpush.msra.mxu0 %v676
    %691 = vmatpush.msra.mxu0 %v670
    %692 = vmatpush.msra.mxu0 %v668
    %693 = vmatpush.msra.mxu0 %v666
    %694 = vmatpush.msra.mxu0 %v664
    %695 = vmatpush.msra.mxu0 %v658
    %696 = vmatpush.msra.mxu0 %v656
    %697 = vmatpush.msra.mxu0 %v654
    %698 = vmatpush.msra.mxu0 %v652
    %699 = vmatpush.msra.mxu0 %v645
    %700 = vmatpush.msra.mxu0 %v642
    %701 = vmatpush.msra.mxu0 %v639
    %702 = vmatpush.msra.mxu0 %v636
    %703 = vmatmul.f32.gmra.mxu0 %v125
    %v704 = vpop.f32.mrf.mxu0
    %v705 = vadd.f32 %v116, %v704
    %706 = vmatmul.f32.gmra.mxu0 %v126
    %v707 = vpop.f32.mrf.mxu0
    %v708 = vadd.f32 %v117, %v707
    %709 = vmatmul.f32.gmra.mxu0 %v127
    %v710 = vpop.f32.mrf.mxu0
    %v711 = vadd.f32 %v118, %v710
    %712 = vmatmul.f32.gmra.mxu0 %v128
    %v713 = vpop.f32.mrf.mxu0
    %v714 = vadd.f32 %v119, %v713
    %715 = vdwg.mxu0
    %v716 = vtanh.pop %v705
    %v717 = vtanh.pop %v708
    %v718 = vtanh.pop %v711
    %v719 = vtanh.pop %v714
    %v720 = vadd.f32 %v716, %v188
    %v721 = vadd.f32 %v717, %v191
    %v722 = vadd.f32 %v718, %v194
    %v723 = vadd.f32 %v719, %v197
    %v724 = vsel %vm157, %v720, 0.0
    %725 = vadd.xlane.f32.xlu0 %v724
    %v726 = vpop.xlane.xlu0 %725
    %v727 = vsel %vm157, %v721, 0.0
    %728 = vadd.xlane.f32.xlu0 %v727
    %v729 = vpop.xlane.xlu0 %728
    %v730 = vsel %vm157, %v722, 0.0
    %731 = vadd.xlane.f32.xlu0 %v730
    %v732 = vpop.xlane.xlu0 %731
    %v733 = vsel %vm157, %v723, 0.0
    %734 = vadd.xlane.f32.xlu0 %v733
    %v735 = vpop.xlane.xlu0 %734
    %v736 = vmul.f32 %v726, %v521
    %v737 = vmul.f32 %v729, %v521
    %v738 = vmul.f32 %v732, %v521
    %v739 = vmul.f32 %v735, %v521
    %v740 = vmul.f32 %v720, %v720
    %v741 = vmul.f32 %v721, %v721
    %v742 = vmul.f32 %v722, %v722
    %v743 = vmul.f32 %v723, %v723
    %v744 = vsel %vm157, %v740, 0.0
    %745 = vadd.xlane.f32.xlu0 %v744
    %v746 = vpop.xlane.xlu0 %745
    %v747 = vsel %vm157, %v741, 0.0
    %748 = vadd.xlane.f32.xlu0 %v747
    %v749 = vpop.xlane.xlu0 %748
    %v750 = vsel %vm157, %v742, 0.0
    %751 = vadd.xlane.f32.xlu0 %v750
    %v752 = vpop.xlane.xlu0 %751
    %v753 = vsel %vm157, %v743, 0.0
    %754 = vadd.xlane.f32.xlu0 %v753
    %v755 = vpop.xlane.xlu0 %754
    %v756 = vmul.f32 %v746, %v521
    %v757 = vmul.f32 %v749, %v521
    %v758 = vmul.f32 %v752, %v521
    %v759 = vmul.f32 %v755, %v521
    %v760 = vsub.f32 %v720, %v736
    %v761 = vsub.f32 %v721, %v737
    %v762 = vsub.f32 %v722, %v738
    %v763 = vsub.f32 %v723, %v739
    %v764 = vmul.f32 %v736, %v736
    %v765 = vmul.f32 %v737, %v737
    %v766 = vmul.f32 %v738, %v738
    %v767 = vmul.f32 %v739, %v739
    %v768 = vsub.f32 %v756, %v764
    %v769 = vsub.f32 %v757, %v765
    %v770 = vsub.f32 %v758, %v766
    %v771 = vsub.f32 %v759, %v767
    %v772 = vadd.f32 %v768, 1e-05
    %v773 = vadd.f32 %v769, 1e-05
    %v774 = vadd.f32 %v770, 1e-05
    %v775 = vadd.f32 %v771, 1e-05
    %v776 = vrsqrt.pop %v772
    %v777 = vmul.f32 %v776, %v772
    %v778 = vmul.f32 %v777, %v776
    %v779 = vmul.f32 0.5, %v778
    %v780 = vsub.f32 1.5, %v779
    %v781 = vmul.f32 %v776, %v780
    %vm782 = vweird.f32 %v772
    %vm783 = vweird.f32 %v776
    %vm784 = vmor %vm782, %vm783
    %v785 = vsel %vm784, %v776, %v781
    %v786 = vrsqrt.pop %v773
    %v787 = vmul.f32 %v786, %v773
    %v788 = vmul.f32 %v787, %v786
    %v789 = vmul.f32 0.5, %v788
    %v790 = vsub.f32 1.5, %v789
    %v791 = vmul.f32 %v786, %v790
    %vm792 = vweird.f32 %v773
    %vm793 = vweird.f32 %v786
    %vm794 = vmor %vm792, %vm793
    %v795 = vsel %vm794, %v786, %v791
    %v796 = vrsqrt.pop %v774
    %v797 = vmul.f32 %v796, %v774
    %v798 = vmul.f32 %v797, %v796
    %v799 = vmul.f32 0.5, %v798
    %v800 = vsub.f32 1.5, %v799
    %v801 = vmul.f32 %v796, %v800
    %vm802 = vweird.f32 %v774
    %vm803 = vweird.f32 %v796
    %vm804 = vmor %vm802, %vm803
    %v805 = vsel %vm804, %v796, %v801
    %v806 = vrsqrt.pop %v775
    %v807 = vmul.f32 %v806, %v775
    %v808 = vmul.f32 %v807, %v806
    %v809 = vmul.f32 0.5, %v808
    %v810 = vsub.f32 1.5, %v809
    %v811 = vmul.f32 %v806, %v810
    %vm812 = vweird.f32 %v775
    %vm813 = vweird.f32 %v806
    %vm814 = vmor %vm812, %vm813
    %v815 = vsel %vm814, %v806, %v811
    %v816 = vmul.f32 %v760, %v785
    %v817 = vmul.f32 %v761, %v795
    %v818 = vmul.f32 %v762, %v805
    %v819 = vmul.f32 %v763, %v815
    %v820 = vperm.slane %v156, 2
    %v822 = vsel %vm157, %v816, 0
    %v825 = vsel %vm157, %v817, 0
    %v828 = vsel %vm157, %v818, 0
    %v831 = vsel %vm157, %v819, 0
    %833 = vmatpush.msra.mxu0 0.0
    %834 = vmatpush.msra.mxu0 0.0
    %835 = vmatpush.msra.mxu0 0.0
    %836 = vmatpush.msra.mxu0 0.0
    %837 = vmatpush.msra.mxu0 0.0
    %838 = vmatpush.msra.mxu0 0.0
    %839 = vmatpush.msra.mxu0 0.0
    %840 = vmatpush.msra.mxu0 0.0
    %841 = vmatpush.msra.mxu0 0.0
    %842 = vmatpush.msra.mxu0 0.0
    %843 = vmatpush.msra.mxu0 0.0
    %844 = vmatpush.msra.mxu0 0.0
    %845 = vmatpush.msra.mxu0 %v109
    %846 = vmatpush.msra.mxu0 %v108
    %847 = vmatpush.msra.mxu0 %v107
    %848 = vmatpush.msra.mxu0 %v106
    %849 = vmatmul.f32.gmra.mxu0 %v822
    %v850 = vpop.f32.mrf.mxu0
    %v851 = vadd.f32 %v820, %v850
    %852 = vmatmul.f32.gmra.mxu0 %v825
    %v853 = vpop.f32.mrf.mxu0
    %v854 = vadd.f32 %v820, %v853
    %855 = vmatmul.f32.gmra.mxu0 %v828
    %v856 = vpop.f32.mrf.mxu0
    %v857 = vadd.f32 %v820, %v856
    %858 = vmatmul.f32.gmra.mxu0 %v831
    %v859 = vpop.f32.mrf.mxu0
    %v860 = vadd.f32 %v820, %v859
    %861 = vdwg.mxu0
    %v862 = vsel %vm157, %v851, 0.0
    %863 = vadd.xlane.f32.xlu0 %v862
    %v864 = vpop.xlane.xlu0 %863
    %v865 = vsel %vm157, %v854, 0.0
    %866 = vadd.xlane.f32.xlu0 %v865
    %v867 = vpop.xlane.xlu0 %866
    %v868 = vsel %vm157, %v857, 0.0
    %869 = vadd.xlane.f32.xlu0 %v868
    %v870 = vpop.xlane.xlu0 %869
    %v871 = vsel %vm157, %v860, 0.0
    %872 = vadd.xlane.f32.xlu0 %v871
    %v873 = vpop.xlane.xlu0 %872
    %v874 = vmul.f32 %v864, %v521
    %v875 = vmul.f32 %v867, %v521
    %v876 = vmul.f32 %v870, %v521
    %v877 = vmul.f32 %v873, %v521
    %v878 = vmul.f32 %v851, %v851
    %v879 = vmul.f32 %v854, %v854
    %v880 = vmul.f32 %v857, %v857
    %v881 = vmul.f32 %v860, %v860
    %v882 = vsel %vm157, %v878, 0.0
    %883 = vadd.xlane.f32.xlu0 %v882
    %v884 = vpop.xlane.xlu0 %883
    %v885 = vsel %vm157, %v879, 0.0
    %886 = vadd.xlane.f32.xlu0 %v885
    %v887 = vpop.xlane.xlu0 %886
    %v888 = vsel %vm157, %v880, 0.0
    %889 = vadd.xlane.f32.xlu0 %v888
    %v890 = vpop.xlane.xlu0 %889
    %v891 = vsel %vm157, %v881, 0.0
    %892 = vadd.xlane.f32.xlu0 %v891
    %v893 = vpop.xlane.xlu0 %892
    %v894 = vmul.f32 %v884, %v521
    %v895 = vmul.f32 %v887, %v521
    %v896 = vmul.f32 %v890, %v521
    %v897 = vmul.f32 %v893, %v521
    %v898 = vsub.f32 %v851, %v874
    %v899 = vsub.f32 %v854, %v875
    %v900 = vsub.f32 %v857, %v876
    %v901 = vsub.f32 %v860, %v877
    %v902 = vmul.f32 %v874, %v874
    %v903 = vmul.f32 %v875, %v875
    %v904 = vmul.f32 %v876, %v876
    %v905 = vmul.f32 %v877, %v877
    %v906 = vsub.f32 %v894, %v902
    %v907 = vsub.f32 %v895, %v903
    %v908 = vsub.f32 %v896, %v904
    %v909 = vsub.f32 %v897, %v905
    %v910 = vadd.f32 %v906, 1e-05
    %v911 = vadd.f32 %v907, 1e-05
    %v912 = vadd.f32 %v908, 1e-05
    %v913 = vadd.f32 %v909, 1e-05
    %v914 = vrsqrt.pop %v910
    %v915 = vmul.f32 %v914, %v910
    %v916 = vmul.f32 %v915, %v914
    %v917 = vmul.f32 0.5, %v916
    %v918 = vsub.f32 1.5, %v917
    %v919 = vmul.f32 %v914, %v918
    %vm920 = vweird.f32 %v910
    %vm921 = vweird.f32 %v914
    %vm922 = vmor %vm920, %vm921
    %v923 = vsel %vm922, %v914, %v919
    %v924 = vrsqrt.pop %v911
    %v925 = vmul.f32 %v924, %v911
    %v926 = vmul.f32 %v925, %v924
    %v927 = vmul.f32 0.5, %v926
    %v928 = vsub.f32 1.5, %v927
    %v929 = vmul.f32 %v924, %v928
    %vm930 = vweird.f32 %v911
    %vm931 = vweird.f32 %v924
    %vm932 = vmor %vm930, %vm931
    %v933 = vsel %vm932, %v924, %v929
    %v934 = vrsqrt.pop %v912
    %v935 = vmul.f32 %v934, %v912
    %v936 = vmul.f32 %v935, %v934
    %v937 = vmul.f32 0.5, %v936
    %v938 = vsub.f32 1.5, %v937
    %v939 = vmul.f32 %v934, %v938
    %vm940 = vweird.f32 %v912
    %vm941 = vweird.f32 %v934
    %vm942 = vmor %vm940, %vm941
    %v943 = vsel %vm942, %v934, %v939
    %v944 = vrsqrt.pop %v913
    %v945 = vmul.f32 %v944, %v913
    %v946 = vmul.f32 %v945, %v944
    %v947 = vmul.f32 0.5, %v946
    %v948 = vsub.f32 1.5, %v947
    %v949 = vmul.f32 %v944, %v948
    %vm950 = vweird.f32 %v913
    %vm951 = vweird.f32 %v944
    %vm952 = vmor %vm950, %vm951
    %v953 = vsel %vm952, %v944, %v949
    %v954 = vmul.f32 %v898, %v923
    %v955 = vmul.f32 %v899, %v933
    %v956 = vmul.f32 %v900, %v943
    %v957 = vmul.f32 %v901, %v953
    %v958 = vperm.slane %v156, 3
    %v960 = vsel %vm157, %v954, 0
    %v963 = vsel %vm157, %v955, 0
    %v966 = vsel %vm157, %v956, 0
    %v969 = vsel %vm157, %v957, 0
    %971 = vmatpush.msra.mxu0 0.0
    %972 = vmatpush.msra.mxu0 0.0
    %973 = vmatpush.msra.mxu0 0.0
    %974 = vmatpush.msra.mxu0 0.0
    %975 = vmatpush.msra.mxu0 0.0
    %976 = vmatpush.msra.mxu0 0.0
    %977 = vmatpush.msra.mxu0 0.0
    %978 = vmatpush.msra.mxu0 0.0
    %979 = vmatpush.msra.mxu0 0.0
    %980 = vmatpush.msra.mxu0 0.0
    %981 = vmatpush.msra.mxu0 0.0
    %982 = vmatpush.msra.mxu0 0.0
    %983 = vmatpush.msra.mxu0 %v114
    %984 = vmatpush.msra.mxu0 %v113
    %985 = vmatpush.msra.mxu0 %v112
    %986 = vmatpush.msra.mxu0 %v111
    %987 = vmatmul.f32.gmra.mxu0 %v960
    %v988 = vpop.f32.mrf.mxu0
    %v989 = vadd.f32 %v958, %v988
    %990 = vmatmul.f32.gmra.mxu0 %v963
    %v991 = vpop.f32.mrf.mxu0
    %v992 = vadd.f32 %v958, %v991
    %993 = vmatmul.f32.gmra.mxu0 %v966
    %v994 = vpop.f32.mrf.mxu0
    %v995 = vadd.f32 %v958, %v994
    %996 = vmatmul.f32.gmra.mxu0 %v969
    %v997 = vpop.f32.mrf.mxu0
    %v998 = vadd.f32 %v958, %v997
    %999 = vdwg.mxu0
    %v1000 = vadd.f32 %v851, %v989
    %v1001 = vadd.f32 %v854, %v992
    %v1002 = vadd.f32 %v857, %v995
    %v1003 = vadd.f32 %v860, %v998
    %v1004 = vsel %vm157, %v1000, 0.0
    %1005 = vadd.xlane.f32.xlu0 %v1004
    %v1006 = vpop.xlane.xlu0 %1005
    %v1007 = vsel %vm157, %v1001, 0.0
    %1008 = vadd.xlane.f32.xlu0 %v1007
    %v1009 = vpop.xlane.xlu0 %1008
    %v1010 = vsel %vm157, %v1002, 0.0
    %1011 = vadd.xlane.f32.xlu0 %v1010
    %v1012 = vpop.xlane.xlu0 %1011
    %v1013 = vsel %vm157, %v1003, 0.0
    %1014 = vadd.xlane.f32.xlu0 %v1013
    %v1015 = vpop.xlane.xlu0 %1014
    %v1016 = vmul.f32 %v1006, %v521
    %v1017 = vmul.f32 %v1009, %v521
    %v1018 = vmul.f32 %v1012, %v521
    %v1019 = vmul.f32 %v1015, %v521
    %v1020 = vmul.f32 %v1000, %v1000
    %v1021 = vmul.f32 %v1001, %v1001
    %v1022 = vmul.f32 %v1002, %v1002
    %v1023 = vmul.f32 %v1003, %v1003
    %v1024 = vsel %vm157, %v1020, 0.0
    %1025 = vadd.xlane.f32.xlu0 %v1024
    %v1026 = vpop.xlane.xlu0 %1025
    %v1027 = vsel %vm157, %v1021, 0.0
    %1028 = vadd.xlane.f32.xlu0 %v1027
    %v1029 = vpop.xlane.xlu0 %1028
    %v1030 = vsel %vm157, %v1022, 0.0
    %1031 = vadd.xlane.f32.xlu0 %v1030
    %v1032 = vpop.xlane.xlu0 %1031
    %v1033 = vsel %vm157, %v1023, 0.0
    %1034 = vadd.xlane.f32.xlu0 %v1033
    %v1035 = vpop.xlane.xlu0 %1034
    %v1036 = vmul.f32 %v1026, %v521
    %v1037 = vmul.f32 %v1029, %v521
    %v1038 = vmul.f32 %v1032, %v521
    %v1039 = vmul.f32 %v1035, %v521
    %v1040 = vsub.f32 %v1000, %v1016
    %v1041 = vsub.f32 %v1001, %v1017
    %v1042 = vsub.f32 %v1002, %v1018
    %v1043 = vsub.f32 %v1003, %v1019
    %v1044 = vmul.f32 %v1016, %v1016
    %v1045 = vmul.f32 %v1017, %v1017
    %v1046 = vmul.f32 %v1018, %v1018
    %v1047 = vmul.f32 %v1019, %v1019
    %v1048 = vsub.f32 %v1036, %v1044
    %v1049 = vsub.f32 %v1037, %v1045
    %v1050 = vsub.f32 %v1038, %v1046
    %v1051 = vsub.f32 %v1039, %v1047
    %v1052 = vadd.f32 %v1048, 1e-05
    %v1053 = vadd.f32 %v1049, 1e-05
    %v1054 = vadd.f32 %v1050, 1e-05
    %v1055 = vadd.f32 %v1051, 1e-05
    %v1056 = vrsqrt.pop %v1052
    %v1057 = vmul.f32 %v1056, %v1052
    %v1058 = vmul.f32 %v1057, %v1056
    %v1059 = vmul.f32 0.5, %v1058
    %v1060 = vsub.f32 1.5, %v1059
    %v1061 = vmul.f32 %v1056, %v1060
    %vm1062 = vweird.f32 %v1052
    %vm1063 = vweird.f32 %v1056
    %vm1064 = vmor %vm1062, %vm1063
    %v1065 = vsel %vm1064, %v1056, %v1061
    %v1066 = vrsqrt.pop %v1053
    %v1067 = vmul.f32 %v1066, %v1053
    %v1068 = vmul.f32 %v1067, %v1066
    %v1069 = vmul.f32 0.5, %v1068
    %v1070 = vsub.f32 1.5, %v1069
    %v1071 = vmul.f32 %v1066, %v1070
    %vm1072 = vweird.f32 %v1053
    %vm1073 = vweird.f32 %v1066
    %vm1074 = vmor %vm1072, %vm1073
    %v1075 = vsel %vm1074, %v1066, %v1071
    %v1076 = vrsqrt.pop %v1054
    %v1077 = vmul.f32 %v1076, %v1054
    %v1078 = vmul.f32 %v1077, %v1076
    %v1079 = vmul.f32 0.5, %v1078
    %v1080 = vsub.f32 1.5, %v1079
    %v1081 = vmul.f32 %v1076, %v1080
    %vm1082 = vweird.f32 %v1054
    %vm1083 = vweird.f32 %v1076
    %vm1084 = vmor %vm1082, %vm1083
    %v1085 = vsel %vm1084, %v1076, %v1081
    %v1086 = vrsqrt.pop %v1055
    %v1087 = vmul.f32 %v1086, %v1055
    %v1088 = vmul.f32 %v1087, %v1086
    %v1089 = vmul.f32 0.5, %v1088
    %v1090 = vsub.f32 1.5, %v1089
    %v1091 = vmul.f32 %v1086, %v1090
    %vm1092 = vweird.f32 %v1055
    %vm1093 = vweird.f32 %v1086
    %vm1094 = vmor %vm1092, %vm1093
    %v1095 = vsel %vm1094, %v1086, %v1091
    %v1096 = vmul.f32 %v1040, %v1065
    %v1097 = vmul.f32 %v1041, %v1075
    %v1098 = vmul.f32 %v1042, %v1085
    %v1099 = vmul.f32 %v1043, %v1095
    %v1100 = vperm.slane %v156, 4
    %v1101 = vmul.f32 %v1096, %v1100
    %v1102 = vmul.f32 %v1097, %v1100
    %v1103 = vmul.f32 %v1098, %v1100
    %v1104 = vmul.f32 %v1099, %v1100
    %v1105 = vperm.slane %v156, 5
    %v1106 = vadd.f32 %v1101, %v1105
    %v1107 = vadd.f32 %v1102, %v1105
    %v1108 = vadd.f32 %v1103, %v1105
    %v1109 = vadd.f32 %v1104, %v1105
    %1110 = vst.msk [vmem:[#allocation11] sm:$0xff] %vm157, %v1106
    %1111 = vst.msk [vmem:[#allocation11 + $0x8] sm:$0xff] %vm157, %v1107
    %1112 = vst.msk [vmem:[#allocation11 + $0x10] sm:$0xff] %vm157, %v1108
    %1113 = vst.msk [vmem:[#allocation11 + $0x18] sm:$0xff] %vm157, %v1109
    // Predicated region
    $region42: #{tpu_custom_call.1} parent=1 // pred_check
      _
    $region43: #{tpu_custom_call.1} parent=1 // pred_check_branch
      %1115 = sbr.rel (0) target = $region45
    $region44: #{tpu_custom_call.1} parent=1 // pred_region
      %1117 = vsyncadd [#allocation4], 0
      %s1118 = sshll.u32 [#allocation11], 4
      %s1119 = int_to_ptr.vmem [resolvable:$true] %s1118
      %s1120 = sshll.u32 %s5, 4
      %s1121 = int_to_ptr.hbm [resolvable:$true] %s1120
      %1126 = dma.vmem_to_hbm [thread:$0]  %s1119, 512, %s1121, [#allocation4], 128, 128, 8
    $region45: #{tpu_custom_call.1} parent=1 // pred_fallthru
      _
    // Predicated region
    $region46: #{tpu_custom_call.1} parent=1 // pred_check
      _
    $region47: #{tpu_custom_call.1} parent=1 // pred_check_branch
      %1128 = sbr.rel (0) target = $region49
    $region48: #{tpu_custom_call.1} parent=1 // pred_region
      %1130 = dma.done [#allocation4], 512
    $region49: #{tpu_custom_call.1} parent=1 // pred_fallthru
      _
    %1131 = vsyncpa [#allocation3], 1
    %1132 = vsyncpa [#allocation6], 1
    %1133 = vsyncpa [#allocation9], 1
    %1134 = vsyncpa [#allocation4], 1

</llo_original>
